<compile_context>
chip_gen: v5e
topology: v5e:2x2
jax: 0.10.0
libtpu: 0.0.40
codegen_flags: <defaults>
</compile_context>

<pallas_src>
import jax
import jax.numpy as jnp
from jax.experimental import pallas as pl
from jax.experimental.pallas import tpu as pltpu

LANE = 128     # vreg lane width (last dim)
SUBLANE = 8    # vreg sublane height (second-to-last dim)


def _cdiv(a: int, b: int) -> int:
    return (a + b - 1) // b


def _round_up(x: int, m: int) -> int:
    return _cdiv(x, m) * m


def _vmem_capacity_bytes() -> int:
    """Per-core VMEM capacity; conservative 64 MiB (v7x) if the query fails."""
    try:
        info = pltpu.get_tpu_info()
        cap = getattr(info, "vmem_capacity_bytes", None)
        if cap:
            return int(cap)
    except Exception:
        pass
    return 64 * 1024 * 1024


def _vmem_tile_bytes(tile_m, tile_k, n_pad, x_it, c_it, o_it) -> int:
    # Pallas double-buffers every in/out BlockSpec (even with a constant
    # index_map), so count 2x for x / W / b / out; f32 accumulator is single.
    return (2 * tile_m * tile_k * x_it        # x tile
            + 2 * tile_k * n_pad * c_it       # W tile
            + 2 * n_pad * 4                   # bias
            + 2 * tile_m * n_pad * o_it       # out tile
            + tile_m * n_pad * 4)             # f32 accumulator scratch


def _make_linear_head_kernel(compute_dtype):
    def kernel(x_ref, w_ref, b_ref, o_ref, acc_ref):
        k = pl.program_id(1)

        @pl.when(k == 0)
        def _init():
            acc_ref[...] = jnp.zeros_like(acc_ref)

        # In-kernel cast of the x tile (no host pre-pass); bf16 MXU operands,
        # f32 accumulation.
        acc_ref[...] += jnp.dot(x_ref[...].astype(compute_dtype), w_ref[...],
                                preferred_element_type=jnp.float32)

        @pl.when(k == pl.num_programs(1) - 1)
        def _finalize():
            o_ref[...] = (acc_ref[...] + b_ref[...]).astype(o_ref.dtype)

    return kernel


def model_forward(x, w, b, *, compute_dtype=jnp.bfloat16, out_dtype=None,
                  force_pallas=False, max_tile_m=None, max_tile_k=None):
    """Concrete `Model.forward`: flatten + linear head -> [batch, num_targets].

    Output dtype defaults to `compute_dtype` (bf16) to halve writeback traffic;
    pass out_dtype=jnp.float32 if a f32 head output is required.
    """
    batch = x.shape[0]
    x2 = x.reshape(batch, -1)
    in_features = x2.shape[1]
    num_targets = w.shape[1]
    if out_dtype is None:
        out_dtype = compute_dtype

    # ---- small-shape fallback: fused XLA dot beats pallas_call dispatch ----
    working_set = (batch * in_features + in_features * num_targets) * 4
    if (not force_pallas) and working_set < (1 << 20):
        y = jnp.dot(x2.astype(compute_dtype), w.astype(compute_dtype),
                    preferred_element_type=jnp.float32)
        y = y + b.reshape(1, -1).astype(jnp.float32)
        return y.astype(out_dtype)

    # ---- lane-dense output: pad num_targets up to a multiple of 128 --------
    n_pad = _round_up(num_targets, LANE)

    # ---- generation-aware tile ceilings ------------------------------------
    vmem_cap = _vmem_capacity_bytes()
    budget = int(0.60 * vmem_cap)           # headroom for Mosaic internals
    if max_tile_m is None:
        max_tile_m = 1024 if vmem_cap >= 96 * (1 << 20) else 512
    if max_tile_k is None:
        max_tile_k = 4096 if vmem_cap >= 96 * (1 << 20) else 2048

    # ---- K tiling (bounded VMEM; accumulate over K grid axis) --------------
    if in_features <= max_tile_k:
        num_k, tile_k, k_pad = 1, in_features, in_features
    else:
        num_k = _cdiv(in_features, max_tile_k)
        tile_k = _round_up(_cdiv(in_features, num_k), LANE)
        k_pad = tile_k * num_k

    # ---- balanced M tiling (>= 2 tiles so both v7x TCs get work) -----------
    num_m = _cdiv(batch, max_tile_m)
    if batch >= 2 * SUBLANE:
        num_m = max(num_m, 2)
    tile_m = _round_up(_cdiv(batch, num_m), SUBLANE)

    x_it = jnp.dtype(x2.dtype).itemsize
    c_it = jnp.dtype(compute_dtype).itemsize
    o_it = jnp.dtype(out_dtype).itemsize
    while (tile_m > SUBLANE and
           _vmem_tile_bytes(tile_m, tile_k, n_pad, x_it, c_it, o_it) > budget):
        tile_m = _round_up(_cdiv(tile_m, 2), SUBLANE)
    num_m = _cdiv(batch, tile_m)

    # x goes in untouched (ragged last M tile handled by Pallas); only the
    # rare K remainder (tile_k not dividing in_features) is zero-padded so the
    # K reduction never sees out-of-bounds data.
    x_in = x2 if k_pad == in_features else jnp.pad(
        x2, ((0, 0), (0, k_pad - in_features)))

    # Parameter prep (one-time in a real model): bf16 weights / f32 bias,
    # zero-padded so the sliced output is exact.
    w_p = jnp.zeros((k_pad, n_pad), compute_dtype)
    w_p = w_p.at[:in_features, :num_targets].set(w.astype(compute_dtype))
    b_p = jnp.zeros((1, n_pad), jnp.float32)
    b_p = b_p.at[0, :num_targets].set(b.reshape(-1).astype(jnp.float32))

    vmem_needed = _vmem_tile_bytes(tile_m, tile_k, n_pad, x_it, c_it, o_it)
    vmem_limit = int(min(max(vmem_needed * 5 // 4, 4 * (1 << 20)),
                         int(0.9 * vmem_cap)))

    kernel = _make_linear_head_kernel(compute_dtype)

    out_padded = pl.pallas_call(
        kernel,
        out_shape=jax.ShapeDtypeStruct((batch, n_pad), out_dtype),
        grid=(num_m, num_k),
        in_specs=[
            pl.BlockSpec((tile_m, tile_k), lambda i, k: (i, k)),   # x tile
            pl.BlockSpec((tile_k, n_pad), lambda i, k: (k, 0)),    # W tile
            pl.BlockSpec((1, n_pad), lambda i, k: (0, 0)),         # bias
        ],
        out_specs=pl.BlockSpec((tile_m, n_pad), lambda i, k: (i, 0)),
        scratch_shapes=[pltpu.VMEM((tile_m, n_pad), jnp.float32)],
        compiler_params=pltpu.CompilerParams(
            dimension_semantics=("parallel", "arbitrary"),
            vmem_limit_bytes=vmem_limit,
        ),
    )(x_in, w_p, b_p)

    # Slice away lane padding (real num_targets columns).
    return out_padded[:, :num_targets]


if __name__ == "__main__":
    key = jax.random.PRNGKey(0)
    k1, k2, k3, k4, k5, k6 = jax.random.split(key, 6)

    # ---- Test 1: main kernel path (forced), 4-D input flattened ------------
    batch, C, H, W = 32, 4, 16, 16
    num_targets = 8
    in_features = C * H * W
    x = jax.random.normal(k1, (batch, C, H, W), dtype=jnp.float32)
    w = jax.random.normal(k2, (in_features, num_targets), jnp.float32) * 0.02
    b = jax.random.normal(k3, (num_targets,), jnp.float32) * 0.01

    y = model_forward(x, w, b, force_pallas=True)
    jax.block_until_ready(y)
    assert y.shape == (batch, num_targets)

    x2 = x.reshape(batch, -1)
    ref_bf = jnp.dot(x2.astype(jnp.bfloat16), w.astype(jnp.bfloat16),
                     preferred_element_type=jnp.float32) + b[None, :]
    assert jnp.allclose(y.astype(jnp.float32), ref_bf, atol=2e-2, rtol=2e-2)
    ref_f32 = x2 @ w + b[None, :]
    assert jnp.allclose(y.astype(jnp.float32), ref_f32, atol=6e-2, rtol=6e-2)

    # ---- Test 2: K tiling + ragged batch tile + K remainder padding --------
    batch2, feat2, tgt2 = 24, 384, 10
    xb = jax.random.normal(k4, (batch2, feat2), dtype=jnp.float32)
    wb = jax.random.normal(k5, (feat2, tgt2), jnp.float32) * 0.05
    bb = jax.random.normal(k6, (tgt2,), jnp.float32) * 0.01

    yb = model_forward(xb, wb, bb, force_pallas=True,
                       max_tile_m=16, max_tile_k=100)
    jax.block_until_ready(yb)
    assert yb.shape == (batch2, tgt2)
    ref_b = jnp.dot(xb.astype(jnp.bfloat16), wb.astype(jnp.bfloat16),
                    preferred_element_type=jnp.float32) + bb[None, :]
    assert jnp.allclose(yb.astype(jnp.float32), ref_b, atol=3e-2, rtol=3e-2)

    # ---- Test 3: small-shape auto-dispatch uses the fused XLA fallback -----
    ys = model_forward(xb, wb, bb)   # working set < 1 MiB -> no pallas_call
    assert jnp.allclose(ys.astype(jnp.float32), ref_b, atol=3e-2, rtol=3e-2)

    print("KERNEL_OK")
</pallas_src>

<mosaic_0001>
module attributes {stable_mosaic.version = 11 : i64} {
  func.func @kernel(%arg0: i32, %arg1: i32, %arg2: memref<16x1024xf32, #tpu.memory_space<vmem>>, %arg3: memref<1024x128xbf16, #tpu.memory_space<vmem>>, %arg4: memref<1x128xf32, #tpu.memory_space<vmem>>, %arg5: memref<16x128xbf16, #tpu.memory_space<vmem>>, %arg6: memref<16x128xf32, #tpu.memory_space<vmem>>) attributes {dimension_semantics = [#tpu.dimension_semantics<parallel>, #tpu.dimension_semantics<arbitrary>], iteration_bounds = array<i64: 2, 1>, scalar_prefetch = 0 : i64, scratch_operands = 1 : i64, tpu.core_type = #tpu.core_type<tc>, window_params = [{transform_indices = @transform_0, window_bounds = array<i64: 16, 1024>}, {transform_indices = @transform_1, window_bounds = array<i64: 1024, 128>}, {pipeline_mode = #tpu.pipeline_mode<synchronous>, transform_indices = @transform_2, window_bounds = array<i64: 1, 128>}, {transform_indices = @transform_3, window_bounds = array<i64: 16, 128>}]} {
    %c0_i32 = arith.constant 0 : i32
    %0 = arith.cmpi eq, %arg1, %c0_i32 : i32
    %1 = arith.extui %0 : i1 to i32
    %c0_i32_0 = arith.constant 0 : i32
    %2 = arith.cmpi ne, %1, %c0_i32_0 : i32
    scf.if %2 {
      %cst_10 = arith.constant 0.000000e+00 : f32
      %13 = vector.broadcast %cst_10 : f32 to vector<16x128xf32>
      %c0_11 = arith.constant 0 : index
      %c0_12 = arith.constant 0 : index
      %14 = vector.load %arg6[%c0_11, %c0_12] : memref<16x128xf32, #tpu.memory_space<vmem>>, vector<16x128xf32>
      tpu.vector_store %arg6[%c0_11, %c0_12], %13 {strides = array<i32>} : memref<16x128xf32, #tpu.memory_space<vmem>>, vector<16x128xf32>,
    } else {
    }
    %c0 = arith.constant 0 : index
    %c0_1 = arith.constant 0 : index
    %3 = vector.load %arg6[%c0, %c0_1] : memref<16x128xf32, #tpu.memory_space<vmem>>, vector<16x128xf32>
    %c0_2 = arith.constant 0 : index
    %c0_3 = arith.constant 0 : index
    %4 = vector.load %arg2[%c0_2, %c0_3] : memref<16x1024xf32, #tpu.memory_space<vmem>>, vector<16x1024xf32>
    %5 = arith.truncf %4 : vector<16x1024xf32> to vector<16x1024xbf16>
    %c0_4 = arith.constant 0 : index
    %c0_5 = arith.constant 0 : index
    %6 = vector.load %arg3[%c0_4, %c0_5] : memref<1024x128xbf16, #tpu.memory_space<vmem>>, vector<1024x128xbf16>
    %cst = arith.constant dense<0.000000e+00> : vector<16x128xf32>
    %7 = tpu.matmul %5, %6, %cst {dimension_numbers = #tpu.dot_dimension_numbers<[1], [0], [0], [1], [0, 0, 1, 1], [], []>} : vector<16x1024xbf16>, vector<1024x128xbf16>, vector<16x128xf32> -> vector<16x128xf32>
    %8 = arith.addf %3, %7 : vector<16x128xf32>
    %c0_6 = arith.constant 0 : index
    %c0_7 = arith.constant 0 : index
    %9 = vector.load %arg6[%c0_6, %c0_7] : memref<16x128xf32, #tpu.memory_space<vmem>>, vector<16x128xf32>
    tpu.vector_store %arg6[%c0_6, %c0_7], %8 {strides = array<i32>} : memref<16x128xf32, #tpu.memory_space<vmem>>, vector<16x128xf32>,
    %c0_i32_8 = arith.constant 0 : i32
    %10 = arith.cmpi eq, %arg1, %c0_i32_8 : i32
    %11 = arith.extui %10 : i1 to i32
    %c0_i32_9 = arith.constant 0 : i32
    %12 = arith.cmpi ne, %11, %c0_i32_9 : i32
    scf.if %12 {
      %c0_10 = arith.constant 0 : index
      %c0_11 = arith.constant 0 : index
      %13 = vector.load %arg6[%c0_10, %c0_11] : memref<16x128xf32, #tpu.memory_space<vmem>>, vector<16x128xf32>
      %c0_12 = arith.constant 0 : index
      %c0_13 = arith.constant 0 : index
      %14 = vector.load %arg4[%c0_12, %c0_13] : memref<1x128xf32, #tpu.memory_space<vmem>>, vector<1x128xf32>
      %15 = vector.broadcast %14 : vector<1x128xf32> to vector<16x128xf32>
      %16 = arith.addf %13, %15 : vector<16x128xf32>
      %17 = arith.truncf %16 : vector<16x128xf32> to vector<16x128xbf16>
      %c0_14 = arith.constant 0 : index
      %c0_15 = arith.constant 0 : index
      %18 = vector.load %arg5[%c0_14, %c0_15] : memref<16x128xbf16, #tpu.memory_space<vmem>>, vector<16x128xbf16>
      tpu.vector_store %arg5[%c0_14, %c0_15], %17 {strides = array<i32>} : memref<16x128xbf16, #tpu.memory_space<vmem>>, vector<16x128xbf16>,
    } else {
    }
    return
  }
  func.func @transform_0(%arg0: i32, %arg1: i32) -> (i32, i32) {
    %c0_i32 = arith.constant 0 : i32
    return %arg0, %arg1 : i32, i32
  }
  func.func @transform_1(%arg0: i32, %arg1: i32) -> (i32, i32) {
    %c0_i32 = arith.constant 0 : i32
    %c0_i32_0 = arith.constant 0 : i32
    return %arg1, %c0_i32 : i32, i32
  }
  func.func @transform_2(%arg0: i32, %arg1: i32) -> (i32, i32) {
    %c0_i32 = arith.constant 0 : i32
    %c0_i32_0 = arith.constant 0 : i32
    %c0_i32_1 = arith.constant 0 : i32
    return %c0_i32, %c0_i32_0 : i32, i32
  }
  func.func @transform_3(%arg0: i32, %arg1: i32) -> (i32, i32) {
    %c0_i32 = arith.constant 0 : i32
    %c0_i32_0 = arith.constant 0 : i32
    return %arg0, %c0_i32 : i32, i32
  }
}

</mosaic_0001>

<llo_original>
// kernel: tpu_custom_call.1
$region0: #{tpu_custom_call.1}
  #allocation0 [shape = 'u32[]', space=smem, size = 0x4, offset = 0x4, fixed_abs, tag = 'smem constant byte address 0x4 - core index']
  #allocation1 [shape = 'u32[72,128]{1,0:T(1,128)}', space=vmem, size = 0x9000, scoped, tag = 'internal scratch']
  #allocation2 [shape = 'f32[16,128]{1,0:T(8,128)}', space=vmem, size = 0x2000, scoped, tag = 'scratch operand']
  %s0 = inlined_call_operand.hbm [shape: f32[32,1024], index: 0, kind: input, shape index: {}]
  %s1 = inlined_call_operand.hbm [shape: bf16[1024,128], index: 1, kind: input, shape index: {}]
  %s2 = inlined_call_operand.vmem [shape: f32[1,128], index: 2, kind: input, shape index: {}]
  %s3 = inlined_call_operand.hbm [shape: bf16[32,128], index: 3, kind: output, shape index: {}]
  %s4 = sld [smem:[#allocation0]]
  $region61: #{tpu_custom_call.1} parent=0
    _
  %s6 = ssub.s32 1, %s4
  %s7 = scalar_select 0, %s6, %s4
  $region1: #{tpu_custom_call.1} parent=0
    #allocation3 [shape = 'u8[131072]{0}', space=vmem, size = 0x20000, scoped, tag = 'input window, operand 0']
    #allocation4 [shape = 's32[2]{0}', space=sflag, size = 0x8, scoped, tag = 'scoped memory for tpu_custom_call.1']
    #allocation5 [shape = 's32[2]{0}', space=sflag, size = 0x8, scoped, tag = 'scoped memory for tpu_custom_call.1']
    #allocation6 [shape = 'u8[262144]{0}', space=vmem, size = 0x40000, scoped, tag = 'input window, operand 1, single buffered']
    #allocation7 [shape = 's32[1]{0}', space=sflag, size = 0x4, scoped, tag = 'scoped memory for tpu_custom_call.1']
    #allocation8 [shape = 'u8[8192]{0}', space=vmem, size = 0x2000, scoped, tag = 'output window, operand 0']
    %8 = vsyncpa [#allocation4], 0
    %s9 = scalar_lea.sflag [#allocation4], 1
    %10 = vsyncpa %s9, 0
    %11 = vsyncpa [#allocation7], 0
    %12 = vsyncpa [#allocation5], 0
    %s13 = scalar_lea.sflag [#allocation5], 1
    %14 = vsyncpa %s13, 0
    loop: start=0, step=1, limit=4
    $region2: #{tpu_custom_call.1} parent=1 // loop_pre_header
      _
    $region3: #{tpu_custom_call.1} parent=1 // loop_header
      %s16 = sphi 0, %s20
      %p17 = scmp.ge.s32.totalorder %s16, 4
      %s23 = sphi 0, %s35
      %s24 = sphi 0, %s31
      %s25 = sphi 0, %s23
      %s26 = sphi 0, %s24
      %s27 = sphi 0, %s25
      %s28 = sphi 0, %s26
      %s40 = sphi 0, %s42
      %s43 = sphi 0, %s40
      %s44 = sphi 0, %s43
      %s60 = sphi 0, %s44
      %s66 = sphi 0, %s68
      %s69 = sphi 0, %s66
      %s70 = sphi 0, %s69
      %s86 = sphi 0, %s70
      %s90 = sphi 0, %s90
      %s92 = sphi 0, %s90
      %s93 = sphi 0, %s92
      %s107 = sphi 0, %s93
      %s113 = sphi 0, %s115
      %s116 = sphi 0, %s113
      %s117 = sphi 0, %s116
      %s133 = sphi 0, %s117
    $region4: #{tpu_custom_call.1} parent=1 // loop_header_branch
      %19 = sbr.rel (%p17) target = $region8
    $region5: #{tpu_custom_call.1} parent=1 // loop_body
      %s21 = ssub.s32 %s16, 1
      %s22 = ssub.s32 %s16, 2
      %s29 = sadd.s32 1, %s24
      %p30 = scmp.ge.s32.totalorder %s29, 1
      %s31 = scalar_select %p30, 0, %s29
      %s32 = sadd.s32 1, %s23
      %s33 = scalar_select %p30, %s32, %s23
      %p34 = scmp.ge.s32.totalorder %s33, 2
      %s35 = scalar_select %p34, 0, %s33
      %s36 = ssub.s32 %s23, %s35
      %s37 = ssub.s32 %s24, %s31
      %s38 = sor.u32 %s36, %s37
      %p39 = scmp.eq.s32.totalorder %s38, 0
      %s41 = sadd.s32 %s40, 1
      %s42 = scalar_select %p39, %s40, %s41
      %p45 = pneg %p39
      %p46 = scmp.eq.s32.totalorder %s16, 1
      %p47 = por %p45, %p46
      %p48 = scmp.ne.s32.totalorder %s40, %s43
      %p49 = scmp.eq.s32.totalorder %s16, 0
      %p50 = por %p48, %p49
      %p51 = scmp.ne.s32.totalorder %s40, %s43
      %p52 = scmp.eq.s32.totalorder %s21, 1
      %p53 = por %p51, %p52
      %p54 = scmp.ne.s32.totalorder %s43, %s44
      %p55 = scmp.eq.s32.totalorder %s21, 0
      %p56 = por %p54, %p55
      %p57 = scmp.ne.s32.totalorder %s43, %s44
      %p58 = scmp.eq.s32.totalorder %s22, 1
      %p59 = por %p57, %p58
      %p61 = scmp.ne.s32.totalorder %s44, %s60
      %p62 = scmp.eq.s32.totalorder %s22, 0
      %p63 = por %p61, %p62
      %s64 = ssub.s32 %s24, %s31
      %p65 = scmp.eq.s32.totalorder %s64, 0
      %s67 = sadd.s32 %s66, 1
      %s68 = scalar_select %p65, %s66, %s67
      %p71 = pneg %p65
      %p72 = scmp.eq.s32.totalorder %s16, 1
      %p73 = por %p71, %p72
      %p74 = scmp.ne.s32.totalorder %s66, %s69
      %p75 = scmp.eq.s32.totalorder %s16, 0
      %p76 = por %p74, %p75
      %p77 = scmp.ne.s32.totalorder %s66, %s69
      %p78 = scmp.eq.s32.totalorder %s21, 1
      %p79 = por %p77, %p78
      %p80 = scmp.ne.s32.totalorder %s69, %s70
      %p81 = scmp.eq.s32.totalorder %s21, 0
      %p82 = por %p80, %p81
      %p83 = scmp.ne.s32.totalorder %s69, %s70
      %p84 = scmp.eq.s32.totalorder %s22, 1
      %p85 = por %p83, %p84
      %p87 = scmp.ne.s32.totalorder %s70, %s86
      %p88 = scmp.eq.s32.totalorder %s22, 0
      %p89 = por %p87, %p88
      %s91 = sadd.s32 %s90, 1
      %p94 = scmp.eq.s32.totalorder %s16, 1
      %p95 = scmp.ne.s32.totalorder %s90, %s92
      %p96 = scmp.eq.s32.totalorder %s16, 0
      %p97 = por %p95, %p96
      %p98 = scmp.ne.s32.totalorder %s90, %s92
      %p99 = scmp.eq.s32.totalorder %s21, 1
      %p100 = por %p98, %p99
      %p101 = scmp.ne.s32.totalorder %s92, %s93
      %p102 = scmp.eq.s32.totalorder %s21, 0
      %p103 = por %p101, %p102
      %p104 = scmp.ne.s32.totalorder %s92, %s93
      %p105 = scmp.eq.s32.totalorder %s22, 1
      %p106 = por %p104, %p105
      %p108 = scmp.ne.s32.totalorder %s93, %s107
      %p109 = scmp.eq.s32.totalorder %s22, 0
      %p110 = por %p108, %p109
      %s111 = ssub.s32 %s23, %s35
      %p112 = scmp.eq.s32.totalorder %s111, 0
      %s114 = sadd.s32 %s113, 1
      %s115 = scalar_select %p112, %s113, %s114
      %p118 = pneg %p112
      %p119 = scmp.eq.s32.totalorder %s16, 1
      %p120 = por %p118, %p119
      %p121 = scmp.ne.s32.totalorder %s113, %s116
      %p122 = scmp.eq.s32.totalorder %s16, 0
      %p123 = por %p121, %p122
      %p124 = scmp.ne.s32.totalorder %s113, %s116
      %p125 = scmp.eq.s32.totalorder %s21, 1
      %p126 = por %p124, %p125
      %p127 = scmp.ne.s32.totalorder %s116, %s117
      %p128 = scmp.eq.s32.totalorder %s21, 0
      %p129 = por %p127, %p128
      %p130 = scmp.ne.s32.totalorder %s116, %s117
      %p131 = scmp.eq.s32.totalorder %s22, 1
      %p132 = por %p130, %p131
      %p134 = scmp.ne.s32.totalorder %s117, %s133
      %p135 = scmp.eq.s32.totalorder %s22, 0
      %p136 = por %p134, %p135
      %p137 = scmp.le.s32.totalorder 1, %s16
      %p138 = scmp.lt.s32.totalorder %s16, 3
      %p139 = pnand %p137, %p138
      %p140 = pneg %p139
      // Predicated region
      $region9: #{tpu_custom_call.1} parent=5 // pred_check
        _
      $region10: #{tpu_custom_call.1} parent=5 // pred_check_branch
        %142 = sbr.rel (%p139) target = $region12
      $region11: #{tpu_custom_call.1} parent=5 // pred_region
        %s143 = ssub.s32 %s16, 1
        // Predicated region
        $region13: #{tpu_custom_call.1} parent=11 // pred_check
          %p144 = pneg %p82
        $region14: #{tpu_custom_call.1} parent=11 // pred_check_branch
          %146 = sbr.rel (%p144) target = $region16
        $region15: #{tpu_custom_call.1} parent=11 // pred_region
          %s147 = smul.u32 128, %s26
          %149 = vsyncadd [#allocation7], 0
          %s150 = smul.addr %s147, 4
          %s151 = scalar_lea.hbm %s1, %s150
          %s152 = sshll.u32 %s151, 4
          %s153 = int_to_ptr.hbm [resolvable:$true] %s152
          %s154 = sshll.u32 [#allocation6], 4
          %s155 = int_to_ptr.vmem [resolvable:$true] %s154
          %160 = dma.hbm_to_vmem [thread:$0]  %s153, 8192, %s155, [#allocation7], 64, 64, 4
        $region16: #{tpu_custom_call.1} parent=11 // pred_fallthru
          _
        // Predicated region
        $region17: #{tpu_custom_call.1} parent=11 // pred_check
          %p161 = pneg %p103
        $region18: #{tpu_custom_call.1} parent=11 // pred_check_branch
          %163 = sbr.rel (%p161) target = $region20
        $region19: #{tpu_custom_call.1} parent=11 // pred_region
          _
        $region20: #{tpu_custom_call.1} parent=11 // pred_fallthru
          _
      $region12: #{tpu_custom_call.1} parent=5 // pred_fallthru
        _
      %p164 = scmp.lt.s32.totalorder %s16, 2
      // Predicated region
      $region21: #{tpu_custom_call.1} parent=5 // pred_check
        %p165 = pneg %p164
      $region22: #{tpu_custom_call.1} parent=5 // pred_check_branch
        %167 = sbr.rel (%p165) target = $region24
      $region23: #{tpu_custom_call.1} parent=5 // pred_region
        // Predicated region
        $region25: #{tpu_custom_call.1} parent=23 // pred_check
          %p168 = pneg %p50
        $region26: #{tpu_custom_call.1} parent=23 // pred_check_branch
          %170 = sbr.rel (%p168) target = $region28
        $region27: #{tpu_custom_call.1} parent=23 // pred_region
          %s171 = sand.u32 %s40, 1
          %s172 = scalar_lea.sflag [#allocation4], %s171
          %s173 = sand.u32 %s40, 1
          %s174 = smul.addr %s173, 128
          %s175 = scalar_lea.vmem [#allocation3], %s174
          %s176 = smul.u32 2, %s23
          %s177 = smul.u32 8, %s24
          %179 = vsyncadd %s172, 0
          %s180 = smul.addr %s176, 8
          %s181 = sadd.s32 %s177, %s180
          %s182 = smul.addr %s181, 8
          %s183 = scalar_lea.hbm %s0, %s182
          %s184 = sshll.u32 %s183, 4
          %s185 = int_to_ptr.hbm [resolvable:$true] %s184
          %s186 = sshll.u32 %s175, 4
          %s187 = int_to_ptr.vmem [resolvable:$true] %s186
          %192 = dma.hbm_to_vmem [thread:$0]  %s185, 2048, %s187, %s172, 1024, 1024, 64
        $region28: #{tpu_custom_call.1} parent=23 // pred_fallthru
          _
      $region24: #{tpu_custom_call.1} parent=5 // pred_fallthru
        _
      %p193 = scmp.le.s32.totalorder 1, %s16
      %p194 = scmp.lt.s32.totalorder %s16, 3
      %p195 = pnand %p193, %p194
      %p196 = pneg %p195
      // Predicated region
      $region29: #{tpu_custom_call.1} parent=5 // pred_check
        _
      $region30: #{tpu_custom_call.1} parent=5 // pred_check_branch
        %198 = sbr.rel (%p195) target = $region32
      $region31: #{tpu_custom_call.1} parent=5 // pred_region
        %s199 = ssub.s32 %s16, 1
        %s200 = sand.u32 %s43, 1
        %s201 = scalar_lea.sflag [#allocation4], %s200
        %s202 = sand.u32 %s43, 1
        %s203 = smul.addr %s202, 128
        %s204 = scalar_lea.vmem [#allocation3], %s203
        // Predicated region
        $region33: #{tpu_custom_call.1} parent=31 // pred_check
          %p205 = pneg %p56
        $region34: #{tpu_custom_call.1} parent=31 // pred_check_branch
          %207 = sbr.rel (%p205) target = $region36
        $region35: #{tpu_custom_call.1} parent=31 // pred_region
          %209 = dma.done %s201, 2048
        $region36: #{tpu_custom_call.1} parent=31 // pred_fallthru
          _
        // Predicated region
        $region37: #{tpu_custom_call.1} parent=31 // pred_check
          %p210 = pneg %p82
        $region38: #{tpu_custom_call.1} parent=31 // pred_check_branch
          %212 = sbr.rel (%p210) target = $region40
        $region39: #{tpu_custom_call.1} parent=31 // pred_region
          %214 = dma.done [#allocation7], 8192
        $region40: #{tpu_custom_call.1} parent=31 // pred_fallthru
          _
        %s215 = sand.u32 %s43, 1
        %s216 = scalar_lea.sflag [#allocation4], %s215
        %s217 = sand.u32 %s43, 1
        %s218 = smul.addr %s217, 128
        %s219 = scalar_lea.vmem [#allocation3], %s218
        %p220 = pneg %p56
        %p221 = pneg %p53
        %p222 = pneg %p82
        %p223 = pneg %p79
        %p224 = pneg %p103
        %p225 = pneg %p100
        %p226 = pneg %p129
        %p227 = pneg %p126
        %s228 = sand.u32 %s116, 1
        %s229 = scalar_lea.sflag [#allocation5], %s228
        %s230 = sand.u32 %s116, 1
        %s231 = smul.addr %s230, 8
        %s232 = scalar_lea.vmem [#allocation8], %s231
        %s233 = smul.u32 2, %s25
        %s234 = smul.u32 8, %s26
        %s235 = smul.u32 128, %s26
        %s236 = smul.u32 2, %s25
        %p237 = scmp.eq.s32.totalorder %s26, 0
        // Predicated region
        $region41: #{tpu_custom_call.1} parent=31 // pred_check
          %p238 = pneg %p237
        $region42: #{tpu_custom_call.1} parent=31 // pred_check_branch
          %240 = sbr.rel (%p238) target = $region44
        $region43: #{tpu_custom_call.1} parent=31 // pred_region
          %241 = vst [vmem:[#allocation2] sm:$0xff] 0.0
          %242 = vst [vmem:[#allocation2 + $0x8] sm:$0xff] 0.0
        $region44: #{tpu_custom_call.1} parent=31 // pred_fallthru
          _
        %v243 = vld [vmem:[#allocation2] sm:$0xff]
        %v244 = vld [vmem:[#allocation2 + $0x8] sm:$0xff]
        %v245 = vld [vmem:[%s204] sm:$0xff]
        %v246 = vld [vmem:[%s204 + $0x8] sm:$0xff]
        %v247 = vld [vmem:[%s204 + $0x10] sm:$0xff]
        %v248 = vld [vmem:[%s204 + $0x18] sm:$0xff]
        %v249 = vld [vmem:[%s204 + $0x20] sm:$0xff]
        %v250 = vld [vmem:[%s204 + $0x28] sm:$0xff]
        %v251 = vld [vmem:[%s204 + $0x30] sm:$0xff]
        %v252 = vld [vmem:[%s204 + $0x38] sm:$0xff]
        %v253 = vld [vmem:[%s204 + $0x40] sm:$0xff]
        %v254 = vld [vmem:[%s204 + $0x48] sm:$0xff]
        %v255 = vld [vmem:[%s204 + $0x50] sm:$0xff]
        %v256 = vld [vmem:[%s204 + $0x58] sm:$0xff]
        %v257 = vld [vmem:[%s204 + $0x60] sm:$0xff]
        %v258 = vld [vmem:[%s204 + $0x68] sm:$0xff]
        %v259 = vld [vmem:[%s204 + $0x70] sm:$0xff]
        %v260 = vld [vmem:[%s204 + $0x78] sm:$0xff]
        %v261 = vpack.c.bf16 %v253, %v245
        %v262 = vpack.c.bf16 %v254, %v246
        %v263 = vpack.c.bf16 %v255, %v247
        %v264 = vpack.c.bf16 %v256, %v248
        %v265 = vpack.c.bf16 %v257, %v249
        %v266 = vpack.c.bf16 %v258, %v250
        %v267 = vpack.c.bf16 %v259, %v251
        %v268 = vpack.c.bf16 %v260, %v252
        %v269 = vld [vmem:[#allocation6] sm:$0xf]
        %v270 = vld [vmem:[#allocation6 + $0x4] sm:$0xf]
        %v271 = vld [vmem:[#allocation6 + $0x8] sm:$0xf]
        %v272 = vld [vmem:[#allocation6 + $0xc] sm:$0xf]
        %v273 = vld [vmem:[#allocation6 + $0x10] sm:$0xf]
        %v274 = vld [vmem:[#allocation6 + $0x14] sm:$0xf]
        %v275 = vld [vmem:[#allocation6 + $0x18] sm:$0xf]
        %v276 = vld [vmem:[#allocation6 + $0x1c] sm:$0xf]
        %v277 = vld [vmem:[#allocation6 + $0x20] sm:$0xf]
        %v278 = vld [vmem:[#allocation6 + $0x24] sm:$0xf]
        %v279 = vld [vmem:[#allocation6 + $0x28] sm:$0xf]
        %v280 = vld [vmem:[#allocation6 + $0x2c] sm:$0xf]
        %v281 = vld [vmem:[#allocation6 + $0x30] sm:$0xf]
        %v282 = vld [vmem:[#allocation6 + $0x34] sm:$0xf]
        %v283 = vld [vmem:[#allocation6 + $0x38] sm:$0xf]
        %v284 = vld [vmem:[#allocation6 + $0x3c] sm:$0xf]
        %v285 = vld [vmem:[#allocation6 + $0x40] sm:$0xf]
        %v286 = vld [vmem:[#allocation6 + $0x44] sm:$0xf]
        %v287 = vld [vmem:[#allocation6 + $0x48] sm:$0xf]
        %v288 = vld [vmem:[#allocation6 + $0x4c] sm:$0xf]
        %v289 = vld [vmem:[#allocation6 + $0x50] sm:$0xf]
        %v290 = vld [vmem:[#allocation6 + $0x54] sm:$0xf]
        %v291 = vld [vmem:[#allocation6 + $0x58] sm:$0xf]
        %v292 = vld [vmem:[#allocation6 + $0x5c] sm:$0xf]
        %v293 = vld [vmem:[#allocation6 + $0x60] sm:$0xf]
        %v294 = vld [vmem:[#allocation6 + $0x64] sm:$0xf]
        %v295 = vld [vmem:[#allocation6 + $0x68] sm:$0xf]
        %v296 = vld [vmem:[#allocation6 + $0x6c] sm:$0xf]
        %v297 = vld [vmem:[#allocation6 + $0x70] sm:$0xf]
        %v298 = vld [vmem:[#allocation6 + $0x74] sm:$0xf]
        %v299 = vld [vmem:[#allocation6 + $0x78] sm:$0xf]
        %v300 = vld [vmem:[#allocation6 + $0x7c] sm:$0xf]
        %v301 = vld [vmem:[#allocation6 + $0x80] sm:$0xf]
        %v302 = vld [vmem:[#allocation6 + $0x84] sm:$0xf]
        %v303 = vld [vmem:[#allocation6 + $0x88] sm:$0xf]
        %v304 = vld [vmem:[#allocation6 + $0x8c] sm:$0xf]
        %v305 = vld [vmem:[#allocation6 + $0x90] sm:$0xf]
        %v306 = vld [vmem:[#allocation6 + $0x94] sm:$0xf]
        %v307 = vld [vmem:[#allocation6 + $0x98] sm:$0xf]
        %v308 = vld [vmem:[#allocation6 + $0x9c] sm:$0xf]
        %v309 = vld [vmem:[#allocation6 + $0xa0] sm:$0xf]
        %v310 = vld [vmem:[#allocation6 + $0xa4] sm:$0xf]
        %v311 = vld [vmem:[#allocation6 + $0xa8] sm:$0xf]
        %v312 = vld [vmem:[#allocation6 + $0xac] sm:$0xf]
        %v313 = vld [vmem:[#allocation6 + $0xb0] sm:$0xf]
        %v314 = vld [vmem:[#allocation6 + $0xb4] sm:$0xf]
        %v315 = vld [vmem:[#allocation6 + $0xb8] sm:$0xf]
        %v316 = vld [vmem:[#allocation6 + $0xbc] sm:$0xf]
        %v317 = vld [vmem:[#allocation6 + $0xc0] sm:$0xf]
        %v318 = vld [vmem:[#allocation6 + $0xc4] sm:$0xf]
        %v319 = vld [vmem:[#allocation6 + $0xc8] sm:$0xf]
        %v320 = vld [vmem:[#allocation6 + $0xcc] sm:$0xf]
        %v321 = vld [vmem:[#allocation6 + $0xd0] sm:$0xf]
        %v322 = vld [vmem:[#allocation6 + $0xd4] sm:$0xf]
        %v323 = vld [vmem:[#allocation6 + $0xd8] sm:$0xf]
        %v324 = vld [vmem:[#allocation6 + $0xdc] sm:$0xf]
        %v325 = vld [vmem:[#allocation6 + $0xe0] sm:$0xf]
        %v326 = vld [vmem:[#allocation6 + $0xe4] sm:$0xf]
        %v327 = vld [vmem:[#allocation6 + $0xe8] sm:$0xf]
        %v328 = vld [vmem:[#allocation6 + $0xec] sm:$0xf]
        %v329 = vld [vmem:[#allocation6 + $0xf0] sm:$0xf]
        %v330 = vld [vmem:[#allocation6 + $0xf4] sm:$0xf]
        %v331 = vld [vmem:[#allocation6 + $0xf8] sm:$0xf]
        %v332 = vld [vmem:[#allocation6 + $0xfc] sm:$0xf]
        %v333 = vld [vmem:[#allocation6 + $0x100] sm:$0xf]
        %v334 = vld [vmem:[#allocation6 + $0x104] sm:$0xf]
        %v335 = vld [vmem:[#allocation6 + $0x108] sm:$0xf]
        %v336 = vld [vmem:[#allocation6 + $0x10c] sm:$0xf]
        %v337 = vld [vmem:[#allocation6 + $0x110] sm:$0xf]
        %v338 = vld [vmem:[#allocation6 + $0x114] sm:$0xf]
        %v339 = vld [vmem:[#allocation6 + $0x118] sm:$0xf]
        %v340 = vld [vmem:[#allocation6 + $0x11c] sm:$0xf]
        %v341 = vld [vmem:[#allocation6 + $0x120] sm:$0xf]
        %v342 = vld [vmem:[#allocation6 + $0x124] sm:$0xf]
        %v343 = vld [vmem:[#allocation6 + $0x128] sm:$0xf]
        %v344 = vld [vmem:[#allocation6 + $0x12c] sm:$0xf]
        %v345 = vld [vmem:[#allocation6 + $0x130] sm:$0xf]
        %v346 = vld [vmem:[#allocation6 + $0x134] sm:$0xf]
        %v347 = vld [vmem:[#allocation6 + $0x138] sm:$0xf]
        %v348 = vld [vmem:[#allocation6 + $0x13c] sm:$0xf]
        %v349 = vld [vmem:[#allocation6 + $0x140] sm:$0xf]
        %v350 = vld [vmem:[#allocation6 + $0x144] sm:$0xf]
        %v351 = vld [vmem:[#allocation6 + $0x148] sm:$0xf]
        %v352 = vld [vmem:[#allocation6 + $0x14c] sm:$0xf]
        %v353 = vld [vmem:[#allocation6 + $0x150] sm:$0xf]
        %v354 = vld [vmem:[#allocation6 + $0x154] sm:$0xf]
        %v355 = vld [vmem:[#allocation6 + $0x158] sm:$0xf]
        %v356 = vld [vmem:[#allocation6 + $0x15c] sm:$0xf]
        %v357 = vld [vmem:[#allocation6 + $0x160] sm:$0xf]
        %v358 = vld [vmem:[#allocation6 + $0x164] sm:$0xf]
        %v359 = vld [vmem:[#allocation6 + $0x168] sm:$0xf]
        %v360 = vld [vmem:[#allocation6 + $0x16c] sm:$0xf]
        %v361 = vld [vmem:[#allocation6 + $0x170] sm:$0xf]
        %v362 = vld [vmem:[#allocation6 + $0x174] sm:$0xf]
        %v363 = vld [vmem:[#allocation6 + $0x178] sm:$0xf]
        %v364 = vld [vmem:[#allocation6 + $0x17c] sm:$0xf]
        %v365 = vld [vmem:[#allocation6 + $0x180] sm:$0xf]
        %v366 = vld [vmem:[#allocation6 + $0x184] sm:$0xf]
        %v367 = vld [vmem:[#allocation6 + $0x188] sm:$0xf]
        %v368 = vld [vmem:[#allocation6 + $0x18c] sm:$0xf]
        %v369 = vld [vmem:[#allocation6 + $0x190] sm:$0xf]
        %v370 = vld [vmem:[#allocation6 + $0x194] sm:$0xf]
        %v371 = vld [vmem:[#allocation6 + $0x198] sm:$0xf]
        %v372 = vld [vmem:[#allocation6 + $0x19c] sm:$0xf]
        %v373 = vld [vmem:[#allocation6 + $0x1a0] sm:$0xf]
        %v374 = vld [vmem:[#allocation6 + $0x1a4] sm:$0xf]
        %v375 = vld [vmem:[#allocation6 + $0x1a8] sm:$0xf]
        %v376 = vld [vmem:[#allocation6 + $0x1ac] sm:$0xf]
        %v377 = vld [vmem:[#allocation6 + $0x1b0] sm:$0xf]
        %v378 = vld [vmem:[#allocation6 + $0x1b4] sm:$0xf]
        %v379 = vld [vmem:[#allocation6 + $0x1b8] sm:$0xf]
        %v380 = vld [vmem:[#allocation6 + $0x1bc] sm:$0xf]
        %v381 = vld [vmem:[#allocation6 + $0x1c0] sm:$0xf]
        %v382 = vld [vmem:[#allocation6 + $0x1c4] sm:$0xf]
        %v383 = vld [vmem:[#allocation6 + $0x1c8] sm:$0xf]
        %v384 = vld [vmem:[#allocation6 + $0x1cc] sm:$0xf]
        %v385 = vld [vmem:[#allocation6 + $0x1d0] sm:$0xf]
        %v386 = vld [vmem:[#allocation6 + $0x1d4] sm:$0xf]
        %v387 = vld [vmem:[#allocation6 + $0x1d8] sm:$0xf]
        %v388 = vld [vmem:[#allocation6 + $0x1dc] sm:$0xf]
        %v389 = vld [vmem:[#allocation6 + $0x1e0] sm:$0xf]
        %v390 = vld [vmem:[#allocation6 + $0x1e4] sm:$0xf]
        %v391 = vld [vmem:[#allocation6 + $0x1e8] sm:$0xf]
        %v392 = vld [vmem:[#allocation6 + $0x1ec] sm:$0xf]
        %v393 = vld [vmem:[#allocation6 + $0x1f0] sm:$0xf]
        %v394 = vld [vmem:[#allocation6 + $0x1f4] sm:$0xf]
        %v395 = vld [vmem:[#allocation6 + $0x1f8] sm:$0xf]
        %v396 = vld [vmem:[#allocation6 + $0x1fc] sm:$0xf]
        %v525 = vunpack.c.l.b16 %v269
        %v526 = vunpack.c.l.b16 %v270
        %v527 = vunpack.c.l.b16 %v271
        %v528 = vunpack.c.l.b16 %v272
        %v529 = vunpack.c.l.b16 %v273
        %v530 = vunpack.c.l.b16 %v274
        %v531 = vunpack.c.l.b16 %v275
        %v532 = vunpack.c.l.b16 %v276
        %v533 = vunpack.c.l.b16 %v277
        %v534 = vunpack.c.l.b16 %v278
        %v535 = vunpack.c.l.b16 %v279
        %v536 = vunpack.c.l.b16 %v280
        %v537 = vunpack.c.l.b16 %v281
        %v538 = vunpack.c.l.b16 %v282
        %v539 = vunpack.c.l.b16 %v283
        %v540 = vunpack.c.l.b16 %v284
        %v541 = vunpack.c.l.b16 %v285
        %v542 = vunpack.c.l.b16 %v286
        %v543 = vunpack.c.l.b16 %v287
        %v544 = vunpack.c.l.b16 %v288
        %v545 = vunpack.c.l.b16 %v289
        %v546 = vunpack.c.l.b16 %v290
        %v547 = vunpack.c.l.b16 %v291
        %v548 = vunpack.c.l.b16 %v292
        %v549 = vunpack.c.l.b16 %v293
        %v550 = vunpack.c.l.b16 %v294
        %v551 = vunpack.c.l.b16 %v295
        %v552 = vunpack.c.l.b16 %v296
        %v553 = vunpack.c.l.b16 %v297
        %v554 = vunpack.c.l.b16 %v298
        %v555 = vunpack.c.l.b16 %v299
        %v556 = vunpack.c.l.b16 %v300
        %v557 = vunpack.c.l.b16 %v301
        %v558 = vunpack.c.l.b16 %v302
        %v559 = vunpack.c.l.b16 %v303
        %v560 = vunpack.c.l.b16 %v304
        %v561 = vunpack.c.l.b16 %v305
        %v562 = vunpack.c.l.b16 %v306
        %v563 = vunpack.c.l.b16 %v307
        %v564 = vunpack.c.l.b16 %v308
        %v565 = vunpack.c.l.b16 %v309
        %v566 = vunpack.c.l.b16 %v310
        %v567 = vunpack.c.l.b16 %v311
        %v568 = vunpack.c.l.b16 %v312
        %v569 = vunpack.c.l.b16 %v313
        %v570 = vunpack.c.l.b16 %v314
        %v571 = vunpack.c.l.b16 %v315
        %v572 = vunpack.c.l.b16 %v316
        %v573 = vunpack.c.l.b16 %v317
        %v574 = vunpack.c.l.b16 %v318
        %v575 = vunpack.c.l.b16 %v319
        %v576 = vunpack.c.l.b16 %v320
        %v577 = vunpack.c.l.b16 %v321
        %v578 = vunpack.c.l.b16 %v322
        %v579 = vunpack.c.l.b16 %v323
        %v580 = vunpack.c.l.b16 %v324
        %v581 = vunpack.c.l.b16 %v325
        %v582 = vunpack.c.l.b16 %v326
        %v583 = vunpack.c.l.b16 %v327
        %v584 = vunpack.c.l.b16 %v328
        %v585 = vunpack.c.l.b16 %v329
        %v586 = vunpack.c.l.b16 %v330
        %v587 = vunpack.c.l.b16 %v331
        %v588 = vunpack.c.l.b16 %v332
        %v589 = vunpack.c.l.b16 %v333
        %v590 = vunpack.c.l.b16 %v334
        %v591 = vunpack.c.l.b16 %v335
        %v592 = vunpack.c.l.b16 %v336
        %v593 = vunpack.c.l.b16 %v337
        %v594 = vunpack.c.l.b16 %v338
        %v595 = vunpack.c.l.b16 %v339
        %v596 = vunpack.c.l.b16 %v340
        %v597 = vunpack.c.l.b16 %v341
        %v598 = vunpack.c.l.b16 %v342
        %v599 = vunpack.c.l.b16 %v343
        %v600 = vunpack.c.l.b16 %v344
        %v601 = vunpack.c.l.b16 %v345
        %v602 = vunpack.c.l.b16 %v346
        %v603 = vunpack.c.l.b16 %v347
        %v604 = vunpack.c.l.b16 %v348
        %v605 = vunpack.c.l.b16 %v349
        %v606 = vunpack.c.l.b16 %v350
        %v607 = vunpack.c.l.b16 %v351
        %v608 = vunpack.c.l.b16 %v352
        %v609 = vunpack.c.l.b16 %v353
        %v610 = vunpack.c.l.b16 %v354
        %v611 = vunpack.c.l.b16 %v355
        %v612 = vunpack.c.l.b16 %v356
        %v613 = vunpack.c.l.b16 %v357
        %v614 = vunpack.c.l.b16 %v358
        %v615 = vunpack.c.l.b16 %v359
        %v616 = vunpack.c.l.b16 %v360
        %v617 = vunpack.c.l.b16 %v361
        %v618 = vunpack.c.l.b16 %v362
        %v619 = vunpack.c.l.b16 %v363
        %v620 = vunpack.c.l.b16 %v364
        %v621 = vunpack.c.l.b16 %v365
        %v622 = vunpack.c.l.b16 %v366
        %v623 = vunpack.c.l.b16 %v367
        %v624 = vunpack.c.l.b16 %v368
        %v625 = vunpack.c.l.b16 %v369
        %v626 = vunpack.c.l.b16 %v370
        %v627 = vunpack.c.l.b16 %v371
        %v628 = vunpack.c.l.b16 %v372
        %v629 = vunpack.c.l.b16 %v373
        %v630 = vunpack.c.l.b16 %v374
        %v631 = vunpack.c.l.b16 %v375
        %v632 = vunpack.c.l.b16 %v376
        %v633 = vunpack.c.l.b16 %v377
        %v634 = vunpack.c.l.b16 %v378
        %v635 = vunpack.c.l.b16 %v379
        %v636 = vunpack.c.l.b16 %v380
        %v637 = vunpack.c.l.b16 %v381
        %v638 = vunpack.c.l.b16 %v382
        %v639 = vunpack.c.l.b16 %v383
        %v640 = vunpack.c.l.b16 %v384
        %v641 = vunpack.c.l.b16 %v385
        %v642 = vunpack.c.l.b16 %v386
        %v643 = vunpack.c.l.b16 %v387
        %v644 = vunpack.c.l.b16 %v388
        %v645 = vunpack.c.l.b16 %v389
        %v646 = vunpack.c.l.b16 %v390
        %v647 = vunpack.c.l.b16 %v391
        %v648 = vunpack.c.l.b16 %v392
        %v649 = vunpack.c.l.b16 %v393
        %v650 = vunpack.c.l.b16 %v394
        %v651 = vunpack.c.l.b16 %v395
        %v652 = vunpack.c.l.b16 %v396
        %v653 = vpack.c.b16 %v526, %v525
        %v654 = vpack.c.b16 %v528, %v527
        %v655 = vpack.c.b16 %v530, %v529
        %v656 = vpack.c.b16 %v532, %v531
        %v657 = vpack.c.b16 %v534, %v533
        %v658 = vpack.c.b16 %v536, %v535
        %v659 = vpack.c.b16 %v538, %v537
        %v660 = vpack.c.b16 %v540, %v539
        %v661 = vpack.c.b16 %v542, %v541
        %v662 = vpack.c.b16 %v544, %v543
        %v663 = vpack.c.b16 %v546, %v545
        %v664 = vpack.c.b16 %v548, %v547
        %v665 = vpack.c.b16 %v550, %v549
        %v666 = vpack.c.b16 %v552, %v551
        %v667 = vpack.c.b16 %v554, %v553
        %v668 = vpack.c.b16 %v556, %v555
        %v669 = vpack.c.b16 %v558, %v557
        %v670 = vpack.c.b16 %v560, %v559
        %v671 = vpack.c.b16 %v562, %v561
        %v672 = vpack.c.b16 %v564, %v563
        %v673 = vpack.c.b16 %v566, %v565
        %v674 = vpack.c.b16 %v568, %v567
        %v675 = vpack.c.b16 %v570, %v569
        %v676 = vpack.c.b16 %v572, %v571
        %v677 = vpack.c.b16 %v574, %v573
        %v678 = vpack.c.b16 %v576, %v575
        %v679 = vpack.c.b16 %v578, %v577
        %v680 = vpack.c.b16 %v580, %v579
        %v681 = vpack.c.b16 %v582, %v581
        %v682 = vpack.c.b16 %v584, %v583
        %v683 = vpack.c.b16 %v586, %v585
        %v684 = vpack.c.b16 %v588, %v587
        %v685 = vpack.c.b16 %v590, %v589
        %v686 = vpack.c.b16 %v592, %v591
        %v687 = vpack.c.b16 %v594, %v593
        %v688 = vpack.c.b16 %v596, %v595
        %v689 = vpack.c.b16 %v598, %v597
        %v690 = vpack.c.b16 %v600, %v599
        %v691 = vpack.c.b16 %v602, %v601
        %v692 = vpack.c.b16 %v604, %v603
        %v693 = vpack.c.b16 %v606, %v605
        %v694 = vpack.c.b16 %v608, %v607
        %v695 = vpack.c.b16 %v610, %v609
        %v696 = vpack.c.b16 %v612, %v611
        %v697 = vpack.c.b16 %v614, %v613
        %v698 = vpack.c.b16 %v616, %v615
        %v699 = vpack.c.b16 %v618, %v617
        %v700 = vpack.c.b16 %v620, %v619
        %v701 = vpack.c.b16 %v622, %v621
        %v702 = vpack.c.b16 %v624, %v623
        %v703 = vpack.c.b16 %v626, %v625
        %v704 = vpack.c.b16 %v628, %v627
        %v705 = vpack.c.b16 %v630, %v629
        %v706 = vpack.c.b16 %v632, %v631
        %v707 = vpack.c.b16 %v634, %v633
        %v708 = vpack.c.b16 %v636, %v635
        %v709 = vpack.c.b16 %v638, %v637
        %v710 = vpack.c.b16 %v640, %v639
        %v711 = vpack.c.b16 %v642, %v641
        %v712 = vpack.c.b16 %v644, %v643
        %v713 = vpack.c.b16 %v646, %v645
        %v714 = vpack.c.b16 %v648, %v647
        %v715 = vpack.c.b16 %v650, %v649
        %v716 = vpack.c.b16 %v652, %v651
        %781 = vmatpush.bf16.msra.mxu0 %v660
        %782 = vmatpush.bf16.msra.mxu0 %v659
        %783 = vmatpush.bf16.msra.mxu0 %v658
        %784 = vmatpush.bf16.msra.mxu0 %v657
        %785 = vmatpush.bf16.msra.mxu0 %v656
        %786 = vmatpush.bf16.msra.mxu0 %v655
        %787 = vmatpush.bf16.msra.mxu0 %v654
        %788 = vmatpush.bf16.msra.mxu0 %v653
        %789 = vmatmul.bf16.gmra.mxu0 %v261
        %v790 = vpop.f32.mrf.mxu0
        %v791 = vadd.f32 0.0, %v790
        %v792 = vpop.f32.mrf.mxu0
        %v793 = vadd.f32 0.0, %v792
        %794 = vdwg.mxu0
        %795 = vmatpush.bf16.msra.mxu0 %v668
        %796 = vmatpush.bf16.msra.mxu0 %v667
        %797 = vmatpush.bf16.msra.mxu0 %v666
        %798 = vmatpush.bf16.msra.mxu0 %v665
        %799 = vmatpush.bf16.msra.mxu0 %v664
        %800 = vmatpush.bf16.msra.mxu0 %v663
        %801 = vmatpush.bf16.msra.mxu0 %v662
        %802 = vmatpush.bf16.msra.mxu0 %v661
        %803 = vmatmul.bf16.gmra.mxu0 %v262
        %v804 = vpop.f32.mrf.mxu0
        %v805 = vadd.f32 %v791, %v804
        %v806 = vpop.f32.mrf.mxu0
        %v807 = vadd.f32 %v793, %v806
        %808 = vdwg.mxu0
        %809 = vmatpush.bf16.msra.mxu0 %v676
        %810 = vmatpush.bf16.msra.mxu0 %v675
        %811 = vmatpush.bf16.msra.mxu0 %v674
        %812 = vmatpush.bf16.msra.mxu0 %v673
        %813 = vmatpush.bf16.msra.mxu0 %v672
        %814 = vmatpush.bf16.msra.mxu0 %v671
        %815 = vmatpush.bf16.msra.mxu0 %v670
        %816 = vmatpush.bf16.msra.mxu0 %v669
        %817 = vmatmul.bf16.gmra.mxu0 %v263
        %v818 = vpop.f32.mrf.mxu0
        %v819 = vadd.f32 %v805, %v818
        %v820 = vpop.f32.mrf.mxu0
        %v821 = vadd.f32 %v807, %v820
        %822 = vdwg.mxu0
        %823 = vmatpush.bf16.msra.mxu0 %v684
        %824 = vmatpush.bf16.msra.mxu0 %v683
        %825 = vmatpush.bf16.msra.mxu0 %v682
        %826 = vmatpush.bf16.msra.mxu0 %v681
        %827 = vmatpush.bf16.msra.mxu0 %v680
        %828 = vmatpush.bf16.msra.mxu0 %v679
        %829 = vmatpush.bf16.msra.mxu0 %v678
        %830 = vmatpush.bf16.msra.mxu0 %v677
        %831 = vmatmul.bf16.gmra.mxu0 %v264
        %v832 = vpop.f32.mrf.mxu0
        %v833 = vadd.f32 %v819, %v832
        %v834 = vpop.f32.mrf.mxu0
        %v835 = vadd.f32 %v821, %v834
        %836 = vdwg.mxu0
        %837 = vmatpush.bf16.msra.mxu0 %v692
        %838 = vmatpush.bf16.msra.mxu0 %v691
        %839 = vmatpush.bf16.msra.mxu0 %v690
        %840 = vmatpush.bf16.msra.mxu0 %v689
        %841 = vmatpush.bf16.msra.mxu0 %v688
        %842 = vmatpush.bf16.msra.mxu0 %v687
        %843 = vmatpush.bf16.msra.mxu0 %v686
        %844 = vmatpush.bf16.msra.mxu0 %v685
        %845 = vmatmul.bf16.gmra.mxu0 %v265
        %v846 = vpop.f32.mrf.mxu0
        %v847 = vadd.f32 %v833, %v846
        %v848 = vpop.f32.mrf.mxu0
        %v849 = vadd.f32 %v835, %v848
        %850 = vdwg.mxu0
        %851 = vmatpush.bf16.msra.mxu0 %v700
        %852 = vmatpush.bf16.msra.mxu0 %v699
        %853 = vmatpush.bf16.msra.mxu0 %v698
        %854 = vmatpush.bf16.msra.mxu0 %v697
        %855 = vmatpush.bf16.msra.mxu0 %v696
        %856 = vmatpush.bf16.msra.mxu0 %v695
        %857 = vmatpush.bf16.msra.mxu0 %v694
        %858 = vmatpush.bf16.msra.mxu0 %v693
        %859 = vmatmul.bf16.gmra.mxu0 %v266
        %v860 = vpop.f32.mrf.mxu0
        %v861 = vadd.f32 %v847, %v860
        %v862 = vpop.f32.mrf.mxu0
        %v863 = vadd.f32 %v849, %v862
        %864 = vdwg.mxu0
        %865 = vmatpush.bf16.msra.mxu0 %v708
        %866 = vmatpush.bf16.msra.mxu0 %v707
        %867 = vmatpush.bf16.msra.mxu0 %v706
        %868 = vmatpush.bf16.msra.mxu0 %v705
        %869 = vmatpush.bf16.msra.mxu0 %v704
        %870 = vmatpush.bf16.msra.mxu0 %v703
        %871 = vmatpush.bf16.msra.mxu0 %v702
        %872 = vmatpush.bf16.msra.mxu0 %v701
        %873 = vmatmul.bf16.gmra.mxu0 %v267
        %v874 = vpop.f32.mrf.mxu0
        %v875 = vadd.f32 %v861, %v874
        %v876 = vpop.f32.mrf.mxu0
        %v877 = vadd.f32 %v863, %v876
        %878 = vdwg.mxu0
        %879 = vmatpush.bf16.msra.mxu0 %v716
        %880 = vmatpush.bf16.msra.mxu0 %v715
        %881 = vmatpush.bf16.msra.mxu0 %v714
        %882 = vmatpush.bf16.msra.mxu0 %v713
        %883 = vmatpush.bf16.msra.mxu0 %v712
        %884 = vmatpush.bf16.msra.mxu0 %v711
        %885 = vmatpush.bf16.msra.mxu0 %v710
        %886 = vmatpush.bf16.msra.mxu0 %v709
        %887 = vmatmul.bf16.gmra.mxu0 %v268
        %v888 = vpop.f32.mrf.mxu0
        %v889 = vadd.f32 %v875, %v888
        %v890 = vpop.f32.mrf.mxu0
        %v891 = vadd.f32 %v877, %v890
        %892 = vdwg.mxu0
        %v893 = vadd.f32 %v243, %v889
        %v894 = vadd.f32 %v244, %v891
        %895 = vst [vmem:[#allocation2] sm:$0xff] %v893
        %896 = vst [vmem:[#allocation2 + $0x8] sm:$0xff] %v894
        // Predicated region
        $region45: #{tpu_custom_call.1} parent=31 // pred_check
          %p897 = pneg %p237
        $region46: #{tpu_custom_call.1} parent=31 // pred_check_branch
          %899 = sbr.rel (%p897) target = $region48
        $region47: #{tpu_custom_call.1} parent=31 // pred_region
          %v900 = vld [vmem:[#allocation2] sm:$0xff]
          %v901 = vld [vmem:[#allocation2 + $0x8] sm:$0xff]
          %v902 = vld [vmem:[%s2] sm:$0x1]
          %v904 = vperm.slane %v902, 0
          %v906 = vadd.f32 %v900, %v904
          %v907 = vadd.f32 %v901, %v904
          %v908 = vpack.c.bf16 %v906, %v906
          %v909 = vpack.c.bf16 %v907, %v907
          %910 = vst [vmem:[%s232] sm:$0xf] %v908
          %911 = vst [vmem:[%s232 + $0x4] sm:$0xf] %v909
        $region48: #{tpu_custom_call.1} parent=31 // pred_fallthru
          _
        %s912 = sand.u32 %s116, 1
        %s913 = scalar_lea.sflag [#allocation5], %s912
        %s914 = sand.u32 %s116, 1
        %s915 = smul.addr %s914, 8
        %s916 = scalar_lea.vmem [#allocation8], %s915
        // Predicated region
        $region49: #{tpu_custom_call.1} parent=31 // pred_check
          %p917 = pneg %p126
        $region50: #{tpu_custom_call.1} parent=31 // pred_check_branch
          %919 = sbr.rel (%p917) target = $region52
        $region51: #{tpu_custom_call.1} parent=31 // pred_region
          %s920 = smul.u32 2, %s25
          %922 = vsyncadd %s913, 0
          %s923 = smul.addr %s920, 4
          %s924 = scalar_lea.hbm %s3, %s923
          %s925 = sshll.u32 %s916, 4
          %s926 = int_to_ptr.vmem [resolvable:$true] %s925
          %s927 = sshll.u32 %s924, 4
          %s928 = int_to_ptr.hbm [resolvable:$true] %s927
          %933 = dma.vmem_to_hbm [thread:$0]  %s926, 128, %s928, %s913, 64, 64, 4
        $region52: #{tpu_custom_call.1} parent=31 // pred_fallthru
          _
      $region32: #{tpu_custom_call.1} parent=5 // pred_fallthru
        _
      %p934 = scmp.le.s32.totalorder 2, %s16
      // Predicated region
      $region53: #{tpu_custom_call.1} parent=5 // pred_check
        %p935 = pneg %p934
      $region54: #{tpu_custom_call.1} parent=5 // pred_check_branch
        %937 = sbr.rel (%p935) target = $region56
      $region55: #{tpu_custom_call.1} parent=5 // pred_region
        %s938 = ssub.s32 %s16, 2
        // Predicated region
        $region57: #{tpu_custom_call.1} parent=55 // pred_check
          %p939 = pneg %p132
        $region58: #{tpu_custom_call.1} parent=55 // pred_check_branch
          %941 = sbr.rel (%p939) target = $region60
        $region59: #{tpu_custom_call.1} parent=55 // pred_region
          %s942 = sand.u32 %s117, 1
          %s943 = scalar_lea.sflag [#allocation5], %s942
          %s944 = sand.u32 %s117, 1
          %s945 = smul.addr %s944, 8
          %s946 = scalar_lea.vmem [#allocation8], %s945
          %948 = dma.done %s943, 128
        $region60: #{tpu_custom_call.1} parent=55 // pred_fallthru
          _
      $region56: #{tpu_custom_call.1} parent=5 // pred_fallthru
        _
    $region6: #{tpu_custom_call.1} parent=1 // loop_footer
      %s20 = sadd.s32 1, %s16
    $region7: #{tpu_custom_call.1} parent=1 // loop_footer_branch
      %15 = sbr.rel target = $region3
    $region8: #{tpu_custom_call.1} parent=1 // loop_exit
      _
    %949 = vsyncpa [#allocation4], 1
    %s950 = scalar_lea.sflag [#allocation4], 1
    %951 = vsyncpa %s950, 1
    %952 = vsyncpa [#allocation7], 1
    %953 = vsyncpa [#allocation5], 1
    %s954 = scalar_lea.sflag [#allocation5], 1
    %955 = vsyncpa %s954, 1

</llo_original>
